<compile_context>
chip_gen: v6e
topology: v6e:2x2x1
jax: 0.10.0
libtpu: 0.0.40
codegen_flags: <defaults>
</compile_context>

<pallas_src>
import jax
import jax.numpy as jnp
from jax import lax
from jax.experimental import pallas as pl
from jax.experimental.pallas import tpu as pltpu

NEG_PAD = -1e30   # bias for padded vocab columns (exp() underflows to 0)


def _round_up(x, m):
    return ((x + m - 1) // m) * m


# -----------------------------------------------------------------------------
# Pallas kernels.  grid = (row_tiles, vocab_tiles); vocab is the reduction axis.
# -----------------------------------------------------------------------------
def _lm_head_loss_kernel(x_ref, w_ref, b_ref, lab_ref, nll_ref, m_sc, s_sc, ll_sc):
    """Loss-only: LM-head matmul + online LSE + in-kernel label-logit gather."""
    j = pl.program_id(1)
    nv = pl.num_programs(1)

    @pl.when(j == 0)
    def _():
        m_sc[...] = jnp.full_like(m_sc, NEG_PAD)     # running max
        s_sc[...] = jnp.zeros_like(s_sc)             # running sum of exp
        ll_sc[...] = jnp.zeros_like(ll_sc)           # gathered label logit

    # bf16 operands on the MXU, f32 accumulation, bias add in f32.
    logits = jnp.dot(x_ref[...], w_ref[...],
                     preferred_element_type=jnp.float32) + b_ref[...]   # (TM, TV)

    # online log-sum-exp over vocab tiles
    m_prev = m_sc[...]
    m_new = jnp.maximum(m_prev, jnp.max(logits, axis=-1, keepdims=True))
    alpha = jnp.exp(m_prev - m_new)
    s_sc[...] = s_sc[...] * alpha + jnp.sum(jnp.exp(logits - m_new),
                                            axis=-1, keepdims=True)
    m_sc[...] = m_new

    # label gather: compare the constant per-tile lane iota against
    # (label - j*tv) so the tile-offset shift is a (TM,1) column op, not (TM,TV).
    tm, tv = logits.shape
    col = lax.broadcasted_iota(jnp.int32, (tm, tv), 1)
    rel = lab_ref[...] - j * tv                                  # (TM, 1)
    hit = col == rel
    ll_sc[...] += jnp.sum(jnp.where(hit, logits, 0.0), axis=-1, keepdims=True)

    @pl.when(j == nv - 1)
    def _():
        # per-token negative log-likelihood = logsumexp - label_logit
        nll_ref[...] = (m_sc[...] + jnp.log(s_sc[...])) - ll_sc[...]


def _lm_head_logits_kernel(x_ref, w_ref, b_ref, logits_ref, lse_ref, m_sc, s_sc):
    """Logits path: bf16 lane-dense logits store + online LSE.
    The label-logit gather is done in the JAX wrapper from the stored logits."""
    j = pl.program_id(1)
    nv = pl.num_programs(1)

    @pl.when(j == 0)
    def _():
        m_sc[...] = jnp.full_like(m_sc, NEG_PAD)
        s_sc[...] = jnp.zeros_like(s_sc)

    logits = jnp.dot(x_ref[...], w_ref[...],
                     preferred_element_type=jnp.float32) + b_ref[...]   # (TM, TV)

    # single lane-dense full-tile store, bf16 (halves the HBM writeback)
    logits_ref[...] = logits.astype(logits_ref.dtype)

    m_prev = m_sc[...]
    m_new = jnp.maximum(m_prev, jnp.max(logits, axis=-1, keepdims=True))
    alpha = jnp.exp(m_prev - m_new)
    s_sc[...] = s_sc[...] * alpha + jnp.sum(jnp.exp(logits - m_new),
                                            axis=-1, keepdims=True)
    m_sc[...] = m_new

    @pl.when(j == nv - 1)
    def _():
        lse_ref[...] = m_sc[...] + jnp.log(s_sc[...])


# -----------------------------------------------------------------------------
# Tiling / VMEM heuristics.
# -----------------------------------------------------------------------------
def _choose_tiles(M, V, tm_req, tv_req):
    # Row tile: 16-aligned (bf16 sublane packing); large by default (weight
    # stream reuse), but keep >= 2 row tiles when M permits so the "parallel"
    # row axis can shard across both v7x TensorCores.
    tm_cap = _round_up(max(M, 1), 16)
    if tm_cap >= 32:
        two_tiles = _round_up(pl.cdiv(M, 2), 16)
        tm = max(16, min(tm_req, two_tiles))
    else:
        tm = tm_cap
    # Vocab tile: lane-dense multiple of 128, never larger than padded V.
    tv = _round_up(min(max(tv_req, 128), _round_up(V, 128)), 128)
    return tm, tv


def _vmem_limit_bytes(tm, tv, H, n_wbuf, return_logits):
    need = (2 * tm * H * 2          # x tile, double-buffered, bf16
            + n_wbuf * H * tv * 2   # W^T tile, n_wbuf-deep, bf16
            + 2 * tv * 4            # bias tile
            + 2 * tm * 4            # labels tile (loss path)
            + 2 * tm * 4            # nll / lse output tile
            + 4 * tm * 4)           # scratch accumulators
    if return_logits:
        need += 2 * tm * tv * 2     # bf16 logits output tile, double-buffered
    need = int(need * 1.5) + (2 << 20)            # slack for compiler scratch
    try:
        cap = int(getattr(pltpu.get_tpu_info(), "vmem_capacity_bytes", 64 << 20))
    except Exception:
        cap = 64 << 20
    return int(min(int(0.75 * cap), max(8 << 20, need)))


# -----------------------------------------------------------------------------
# Fused LM head + cross-entropy wrapper.
# -----------------------------------------------------------------------------
def lm_head_cross_entropy(hidden_tail, embed_weight, final_logits_bias, labels,
                          *, tm=256, tv=1024, return_logits=False):
    """hidden_tail: (B, L-1, H) decoder output with position 0 dropped.
    Returns (mean CE loss over labels != -100, lm_logits or None)."""
    B, Lm1, H = hidden_tail.shape
    V = embed_weight.shape[0]
    M = B * Lm1

    tm, tv = _choose_tiles(M, V, tm, tv)
    Mp = _round_up(M, tm)
    Vp = _round_up(V, tv)
    grid = (Mp // tm, Vp // tv)

    # bf16 matmul operands (f32 accumulation happens on the MXU inside the kernel)
    x = jnp.pad(hidden_tail.reshape(M, H), ((0, Mp - M), (0, 0))).astype(jnp.bfloat16)
    wT = jnp.pad(embed_weight, ((0, Vp - V), (0, 0))).T.astype(jnp.bfloat16)    # (H, Vp)
    bias = jnp.pad(final_logits_bias.reshape(1, V).astype(jnp.float32),
                   ((0, 0), (0, Vp - V)), constant_values=NEG_PAD)              # (1, Vp)

    lab = labels.reshape(M).astype(jnp.int32)
    valid = lab != -100                       # CrossEntropyLoss ignore_index
    # NOTE: labels outside [0, V) other than -100 are not validated (PyTorch raises).
    lab_safe = jnp.where(valid, lab, 0)

    # W^T prefetch depth: triple-buffer the weight stream when the vocab
    # reduction is long enough to benefit.
    n_wbuf = 3 if grid[1] >= 3 else 2
    w_idx = lambda i, j: (0, j)
    if n_wbuf > 2:
        try:
            w_spec = pl.BlockSpec((H, tv), w_idx, pipeline_mode=pl.Buffered(n_wbuf))
        except TypeError:
            w_spec = pl.BlockSpec((H, tv), w_idx)
            n_wbuf = 2
    else:
        w_spec = pl.BlockSpec((H, tv), w_idx)

    vmem_limit = _vmem_limit_bytes(tm, tv, H, n_wbuf, return_logits)

    # x is fetched once per row tile (its block index is constant along j);
    # W^T is streamed once per row tile.
    bytes_accessed = (Mp * H * 2
                      + grid[0] * Vp * H * 2
                      + grid[0] * Vp * 4
                      + Mp * 4
                      + (Mp * Vp * 2 if return_logits else Mp * 4))
    cost = pl.CostEstimate(flops=int(2 * Mp * H * Vp + 8 * Mp * Vp),
                           transcendentals=int(Mp * Vp),
                           bytes_accessed=int(bytes_accessed))

    cparams = pltpu.CompilerParams(
        dimension_semantics=("parallel", "arbitrary"),
        vmem_limit_bytes=vmem_limit)

    if return_logits:
        logits_p, lse_p = pl.pallas_call(
            _lm_head_logits_kernel,
            out_shape=(jax.ShapeDtypeStruct((Mp, Vp), jnp.bfloat16),
                       jax.ShapeDtypeStruct((Mp, 1), jnp.float32)),
            grid_spec=pltpu.PrefetchScalarGridSpec(
                num_scalar_prefetch=0,
                grid=grid,
                in_specs=[
                    pl.BlockSpec((tm, H), lambda i, j: (i, 0)),    # hidden rows
                    w_spec,                                        # embed weight^T
                    pl.BlockSpec((1, tv), lambda i, j: (0, j)),    # final_logits_bias
                ],
                out_specs=(
                    pl.BlockSpec((tm, tv), lambda i, j: (i, j)),   # bf16 lm_logits
                    pl.BlockSpec((tm, 1), lambda i, j: (i, 0)),    # per-token LSE
                ),
                scratch_shapes=[pltpu.VMEM((tm, 1), jnp.float32),  # running max
                                pltpu.VMEM((tm, 1), jnp.float32)], # running sumexp
            ),
            compiler_params=cparams,
            cost_estimate=cost,
        )(x, wT, bias)

        logits_flat = logits_p[:M, :V]
        lse = lse_p[:M, 0]
        # label-logit gather moved out of the kernel (logits already in HBM)
        lab_logit = jnp.take_along_axis(logits_flat.astype(jnp.float32),
                                        lab_safe[:, None], axis=1)[:, 0]
        nll = lse - lab_logit
        lm_logits = logits_flat.reshape(B, Lm1, V)
    else:
        lab_p = jnp.pad(lab_safe, (0, Mp - M)).reshape(Mp, 1)
        nll_p = pl.pallas_call(
            _lm_head_loss_kernel,
            out_shape=jax.ShapeDtypeStruct((Mp, 1), jnp.float32),
            grid_spec=pltpu.PrefetchScalarGridSpec(
                num_scalar_prefetch=0,
                grid=grid,
                in_specs=[
                    pl.BlockSpec((tm, H), lambda i, j: (i, 0)),    # hidden rows
                    w_spec,                                        # embed weight^T
                    pl.BlockSpec((1, tv), lambda i, j: (0, j)),    # final_logits_bias
                    pl.BlockSpec((tm, 1), lambda i, j: (i, 0)),    # labels
                ],
                out_specs=pl.BlockSpec((tm, 1), lambda i, j: (i, 0)),  # per-token NLL
                scratch_shapes=[pltpu.VMEM((tm, 1), jnp.float32),  # running max
                                pltpu.VMEM((tm, 1), jnp.float32),  # running sumexp
                                pltpu.VMEM((tm, 1), jnp.float32)], # label logit
            ),
            compiler_params=cparams,
            cost_estimate=cost,
        )(x, wT, bias, lab_p)
        nll = nll_p[:M, 0]
        lm_logits = None

    # PyTorch CrossEntropyLoss(reduction='mean', ignore_index=-100): mean over
    # non-ignored positions; NaN when every label is ignored (matched here).
    count = jnp.sum(valid.astype(jnp.float32))
    loss = jnp.sum(jnp.where(valid, nll, 0.0)) / count
    return loss, lm_logits


# -----------------------------------------------------------------------------
# Plain-JAX glue: decoder-input preparation, stand-in decoder, params, forward.
# -----------------------------------------------------------------------------
def _prepare_bart_decoder_inputs(pad_token_id, input_ids, decoder_input_ids,
                                 decoder_padding_mask, causal_mask_dtype):
    if decoder_input_ids is None:
        decoder_input_ids = input_ids
    L = decoder_input_ids.shape[1]
    if decoder_padding_mask is None:
        decoder_padding_mask = decoder_input_ids == pad_token_id
    else:
        decoder_padding_mask = decoder_padding_mask.astype(bool)
    causal_mask = jnp.triu(jnp.full((L, L), NEG_PAD, dtype=causal_mask_dtype), k=1)
    return decoder_input_ids, decoder_padding_mask, causal_mask


def standin_decoder(params, dec_ids, encoder_outputs, attention_mask,
                    dec_padding_mask, causal_mask):
    # TODO(synk): the injected BART transformer decoder (self/cross-attention stack
    # with its own weights) is an external submodule; replaced by a deterministic
    # embedding + tanh projection stand-in that respects the padding mask.
    h = jnp.tanh(params['embed'][dec_ids] @ params['wdec'].T + params['bdec'])
    h = jnp.where(dec_padding_mask[..., None], 0.0, h)
    return h  # (B, L, H)


def init_params(key, V, H):
    ks = jax.random.split(key, 3)
    s = 0.02
    return dict(
        embed=jax.random.normal(ks[0], (V, H), jnp.float32) * s,    # decoder.embed_tokens.weight
        wdec=jax.random.normal(ks[1], (H, H), jnp.float32) * s,     # stand-in decoder projection
        bdec=jax.random.normal(ks[2], (H,), jnp.float32) * s,
        final_logits_bias=jnp.zeros((1, V), jnp.float32),           # registered buffer
    )


def forward(params, labels, input_ids, encoder_outputs, attention_mask,
            decoder_input_ids, decoder_attention_mask, pad_token_id,
            *, tm=256, tv=1024, return_logits=False):
    dec_ids, dec_pad_mask, causal_mask = _prepare_bart_decoder_inputs(
        pad_token_id, input_ids, decoder_input_ids, decoder_attention_mask,
        params['embed'].dtype)
    L = dec_ids.shape[1]
    hidden = standin_decoder(params, dec_ids, encoder_outputs, attention_mask,
                             dec_pad_mask, causal_mask[:L, :L])          # (B, L, H)
    # lm_logits = F.linear(hidden[:, 1:], embed_tokens.weight, final_logits_bias)
    # lm_loss   = CrossEntropyLoss()(lm_logits.view(-1, V), labels.view(-1))
    loss, lm_logits = lm_head_cross_entropy(
        hidden[:, 1:], params['embed'], params['final_logits_bias'], labels,
        tm=tm, tv=tv, return_logits=return_logits)
    if return_logits:
        return loss, lm_logits
    return loss                       # module-faithful return (lm_loss only)


def reference_lm_head(embed_weight, final_logits_bias, hidden_tail, labels):
    """Pure-JAX reference (same bf16 operands / f32 accumulation)."""
    B, Lm1, H = hidden_tail.shape
    V = embed_weight.shape[0]
    x = hidden_tail.reshape(-1, H).astype(jnp.bfloat16)
    wT = embed_weight.T.astype(jnp.bfloat16)
    logits = jnp.dot(x, wT, preferred_element_type=jnp.float32) \
        + final_logits_bias.reshape(1, V).astype(jnp.float32)
    logp = jax.nn.log_softmax(logits, axis=-1)
    lab = labels.reshape(-1)
    valid = lab != -100
    safe = jnp.where(valid, lab, 0)
    nll = -jnp.take_along_axis(logp, safe[:, None], axis=1)[:, 0]
    loss = jnp.sum(jnp.where(valid, nll, 0.0)) / jnp.sum(valid.astype(jnp.float32))
    return loss, logits.reshape(B, Lm1, V)


if __name__ == "__main__":
    B, L, H, V = 2, 17, 32, 200       # L-1 = 16 target positions
    Nsrc = 16
    pad_token_id = 1

    key = jax.random.PRNGKey(0)
    k1, k2, k3, k4, kp, kc1, kc2, kc3 = jax.random.split(key, 8)

    decoder_input_ids = jax.random.randint(k1, (B, L), 3, V, dtype=jnp.int32)
    decoder_input_ids = decoder_input_ids.at[:, -2:].set(pad_token_id)
    decoder_attention_mask = decoder_input_ids == pad_token_id
    input_ids = jax.random.randint(k2, (B, Nsrc), 3, V, dtype=jnp.int32)
    attention_mask = jnp.ones((B, Nsrc), jnp.int32)
    encoder_outputs = jax.random.normal(k3, (B, Nsrc, H), jnp.float32)
    labels = jax.random.randint(k4, (B, L - 1), 0, V, dtype=jnp.int32)
    labels = labels.at[0, -1].set(-100)       # exercise CrossEntropyLoss ignore_index

    params = init_params(kp, V, H)

    # 1) loss-only path (matches the PyTorch module's return value)
    loss = forward(params, labels, input_ids, encoder_outputs, attention_mask,
                   decoder_input_ids, decoder_attention_mask, pad_token_id)
    loss = jax.block_until_ready(loss)

    # 2) logits path with small explicit tiles (grid = (2 row tiles, 2 vocab tiles))
    loss2, lm_logits = forward(params, labels, input_ids, encoder_outputs,
                               attention_mask, decoder_input_ids,
                               decoder_attention_mask, pad_token_id,
                               tm=16, tv=128, return_logits=True)
    jax.block_until_ready(lm_logits)

    # pure-JAX reference over the same stand-in decoder hidden states
    dec_ids, dec_pad_mask, causal_mask = _prepare_bart_decoder_inputs(
        pad_token_id, input_ids, decoder_input_ids, decoder_attention_mask,
        params['embed'].dtype)
    hidden = standin_decoder(params, dec_ids, encoder_outputs, attention_mask,
                             dec_pad_mask, causal_mask[:L, :L])
    ref_loss, ref_logits = reference_lm_head(
        params['embed'], params['final_logits_bias'], hidden[:, 1:], labels)

    assert lm_logits.shape == (B, L - 1, V)
    assert jnp.allclose(loss, ref_loss, rtol=1e-3, atol=1e-4), \
        "loss-only path mismatch vs. pure-JAX reference"
    assert jnp.allclose(loss2, ref_loss, rtol=1e-3, atol=2e-3), \
        "logits-path loss mismatch vs. pure-JAX reference"
    ref_bf16 = ref_logits.astype(jnp.bfloat16).astype(jnp.float32)
    assert jnp.allclose(lm_logits.astype(jnp.float32), ref_bf16,
                        rtol=2e-2, atol=2e-2), \
        "logits mismatch vs. pure-JAX reference"

    # 3) loss-only config with >= 3 vocab tiles (exercises Buffered(3) W prefetch
    #    and multiple row tiles)
    Hc, Vc, Mc = 64, 520, 40
    hc = jax.random.normal(kc1, (1, Mc, Hc), jnp.float32) * 0.1
    embc = jax.random.normal(kc2, (Vc, Hc), jnp.float32) * 0.02
    biasc = jnp.zeros((1, Vc), jnp.float32)
    labc = jax.random.randint(kc3, (1, Mc), 0, Vc, dtype=jnp.int32)
    loss_c, _ = lm_head_cross_entropy(hc, embc, biasc, labc, tm=16, tv=128)
    loss_c = jax.block_until_ready(loss_c)
    ref_c, _ = reference_lm_head(embc, biasc, hc, labc)
    assert jnp.allclose(loss_c, ref_c, rtol=1e-3, atol=1e-4), \
        "multi-vocab-tile loss mismatch vs. pure-JAX reference"

    print("KERNEL_OK")
</pallas_src>

<mosaic_0001>
module attributes {stable_mosaic.version = 11 : i64} {
  func.func @_lm_head_loss_kernel(%arg0: i32, %arg1: i32, %arg2: memref<16x32xbf16, #tpu.memory_space<vmem>>, %arg3: memref<32x256xbf16, #tpu.memory_space<vmem>>, %arg4: memref<1x256xf32, #tpu.memory_space<vmem>>, %arg5: memref<16x1xi32, #tpu.memory_space<vmem>>, %arg6: memref<16x1xf32, #tpu.memory_space<vmem>>, %arg7: memref<16x1xf32, #tpu.memory_space<vmem>>, %arg8: memref<16x1xf32, #tpu.memory_space<vmem>>, %arg9: memref<16x1xf32, #tpu.memory_space<vmem>>) attributes {dimension_semantics = [#tpu.dimension_semantics<parallel>, #tpu.dimension_semantics<arbitrary>], iteration_bounds = array<i64: 2, 1>, scalar_prefetch = 0 : i64, scratch_operands = 3 : i64, tpu.core_type = #tpu.core_type<tc>, window_params = [{transform_indices = @transform_0, window_bounds = array<i64: 16, 32>}, {transform_indices = @transform_1, window_bounds = array<i64: 32, 256>}, {transform_indices = @transform_2, window_bounds = array<i64: 1, 256>}, {transform_indices = @transform_3, window_bounds = array<i64: 16, 1>}, {transform_indices = @transform_4, window_bounds = array<i64: 16, 1>}]} {
    %c0_i32 = arith.constant 0 : i32
    %0 = arith.cmpi eq, %arg1, %c0_i32 : i32
    %1 = arith.extui %0 : i1 to i32
    %c0_i32_0 = arith.constant 0 : i32
    %2 = arith.cmpi ne, %1, %c0_i32_0 : i32
    scf.if %2 {
      %cst_26 = arith.constant -1.000000e+30 : f32
      %42 = vector.broadcast %cst_26 : f32 to vector<16x1xf32>
      %c0_27 = arith.constant 0 : index
      %c0_28 = arith.constant 0 : index
      %43 = vector.load %arg7[%c0_27, %c0_28] : memref<16x1xf32, #tpu.memory_space<vmem>>, vector<16x1xf32>
      tpu.vector_store %arg7[%c0_27, %c0_28], %42 {strides = array<i32>} : memref<16x1xf32, #tpu.memory_space<vmem>>, vector<16x1xf32>,
      %cst_29 = arith.constant 0.000000e+00 : f32
      %44 = vector.broadcast %cst_29 : f32 to vector<16x1xf32>
      %c0_30 = arith.constant 0 : index
      %c0_31 = arith.constant 0 : index
      %45 = vector.load %arg8[%c0_30, %c0_31] : memref<16x1xf32, #tpu.memory_space<vmem>>, vector<16x1xf32>
      tpu.vector_store %arg8[%c0_30, %c0_31], %44 {strides = array<i32>} : memref<16x1xf32, #tpu.memory_space<vmem>>, vector<16x1xf32>,
      %cst_32 = arith.constant 0.000000e+00 : f32
      %46 = vector.broadcast %cst_32 : f32 to vector<16x1xf32>
      %c0_33 = arith.constant 0 : index
      %c0_34 = arith.constant 0 : index
      %47 = vector.load %arg9[%c0_33, %c0_34] : memref<16x1xf32, #tpu.memory_space<vmem>>, vector<16x1xf32>
      tpu.vector_store %arg9[%c0_33, %c0_34], %46 {strides = array<i32>} : memref<16x1xf32, #tpu.memory_space<vmem>>, vector<16x1xf32>,
    } else {
    }
    %c0 = arith.constant 0 : index
    %c0_1 = arith.constant 0 : index
    %3 = vector.load %arg2[%c0, %c0_1] : memref<16x32xbf16, #tpu.memory_space<vmem>>, vector<16x32xbf16>
    %c0_2 = arith.constant 0 : index
    %c0_3 = arith.constant 0 : index
    %4 = vector.load %arg3[%c0_2, %c0_3] : memref<32x256xbf16, #tpu.memory_space<vmem>>, vector<32x256xbf16>
    %cst = arith.constant dense<0.000000e+00> : vector<16x256xf32>
    %5 = tpu.matmul %3, %4, %cst {dimension_numbers = #tpu.dot_dimension_numbers<[1], [0], [0], [1], [0, 0, 1, 1], [], []>} : vector<16x32xbf16>, vector<32x256xbf16>, vector<16x256xf32> -> vector<16x256xf32>
    %c0_4 = arith.constant 0 : index
    %c0_5 = arith.constant 0 : index
    %6 = vector.load %arg4[%c0_4, %c0_5] : memref<1x256xf32, #tpu.memory_space<vmem>>, vector<1x256xf32>
    %7 = vector.broadcast %6 : vector<1x256xf32> to vector<16x256xf32>
    %8 = arith.addf %5, %7 : vector<16x256xf32>
    %c0_6 = arith.constant 0 : index
    %c0_7 = arith.constant 0 : index
    %9 = vector.load %arg7[%c0_6, %c0_7] : memref<16x1xf32, #tpu.memory_space<vmem>>, vector<16x1xf32>
    %cst_8 = arith.constant dense<0xFF800000> : vector<16xf32>
    %10 = vector.multi_reduction <maximumf>, %8, %cst_8 [1] : vector<16x256xf32> to vector<16xf32>
    %11 = vector.shape_cast %10 : vector<16xf32> to vector<16x1xf32>
    %12 = arith.maximumf %9, %11 : vector<16x1xf32>
    %13 = arith.subf %9, %12 : vector<16x1xf32>
    %14 = math.exp %13 : vector<16x1xf32>
    %c0_9 = arith.constant 0 : index
    %c0_10 = arith.constant 0 : index
    %15 = vector.load %arg8[%c0_9, %c0_10] : memref<16x1xf32, #tpu.memory_space<vmem>>, vector<16x1xf32>
    %16 = arith.mulf %15, %14 : vector<16x1xf32>
    %17 = vector.broadcast %12 : vector<16x1xf32> to vector<16x256xf32>
    %18 = arith.subf %8, %17 : vector<16x256xf32>
    %19 = math.exp %18 : vector<16x256xf32>
    %cst_11 = arith.constant dense<0.000000e+00> : vector<16xf32>
    %20 = vector.multi_reduction <add>, %19, %cst_11 [1] : vector<16x256xf32> to vector<16xf32>
    %21 = vector.shape_cast %20 : vector<16xf32> to vector<16x1xf32>
    %22 = arith.addf %16, %21 : vector<16x1xf32>
    %c0_12 = arith.constant 0 : index
    %c0_13 = arith.constant 0 : index
    %23 = vector.load %arg8[%c0_12, %c0_13] : memref<16x1xf32, #tpu.memory_space<vmem>>, vector<16x1xf32>
    tpu.vector_store %arg8[%c0_12, %c0_13], %22 {strides = array<i32>} : memref<16x1xf32, #tpu.memory_space<vmem>>, vector<16x1xf32>,
    %c0_14 = arith.constant 0 : index
    %c0_15 = arith.constant 0 : index
    %24 = vector.load %arg7[%c0_14, %c0_15] : memref<16x1xf32, #tpu.memory_space<vmem>>, vector<16x1xf32>
    tpu.vector_store %arg7[%c0_14, %c0_15], %12 {strides = array<i32>} : memref<16x1xf32, #tpu.memory_space<vmem>>, vector<16x1xf32>,
    %25 = tpu.iota {dimensions = array<i32: 1>} : vector<16x256xi32>
    %c0_16 = arith.constant 0 : index
    %c0_17 = arith.constant 0 : index
    %26 = vector.load %arg5[%c0_16, %c0_17] : memref<16x1xi32, #tpu.memory_space<vmem>>, vector<16x1xi32>
    %c256_i32 = arith.constant 256 : i32
    %27 = arith.muli %arg1, %c256_i32 : i32
    %28 = vector.broadcast %27 : i32 to vector<16x1xi32>
    %29 = arith.subi %26, %28 : vector<16x1xi32>
    %30 = vector.broadcast %29 : vector<16x1xi32> to vector<16x256xi32>
    %31 = arith.cmpi eq, %25, %30 : vector<16x256xi32>
    %c0_18 = arith.constant 0 : index
    %c0_19 = arith.constant 0 : index
    %32 = vector.load %arg9[%c0_18, %c0_19] : memref<16x1xf32, #tpu.memory_space<vmem>>, vector<16x1xf32>
    %cst_20 = arith.constant 0.000000e+00 : f32
    %33 = vector.broadcast %cst_20 : f32 to vector<16x256xf32>
    %34 = arith.select %31, %8, %33 : vector<16x256xi1>, vector<16x256xf32>
    %cst_21 = arith.constant dense<0.000000e+00> : vector<16xf32>
    %35 = vector.multi_reduction <add>, %34, %cst_21 [1] : vector<16x256xf32> to vector<16xf32>
    %36 = vector.shape_cast %35 : vector<16xf32> to vector<16x1xf32>
    %37 = arith.addf %32, %36 : vector<16x1xf32>
    %c0_22 = arith.constant 0 : index
    %c0_23 = arith.constant 0 : index
    %38 = vector.load %arg9[%c0_22, %c0_23] : memref<16x1xf32, #tpu.memory_space<vmem>>, vector<16x1xf32>
    tpu.vector_store %arg9[%c0_22, %c0_23], %37 {strides = array<i32>} : memref<16x1xf32, #tpu.memory_space<vmem>>, vector<16x1xf32>,
    %c0_i32_24 = arith.constant 0 : i32
    %39 = arith.cmpi eq, %arg1, %c0_i32_24 : i32
    %40 = arith.extui %39 : i1 to i32
    %c0_i32_25 = arith.constant 0 : i32
    %41 = arith.cmpi ne, %40, %c0_i32_25 : i32
    scf.if %41 {
      %c0_26 = arith.constant 0 : index
      %c0_27 = arith.constant 0 : index
      %42 = vector.load %arg7[%c0_26, %c0_27] : memref<16x1xf32, #tpu.memory_space<vmem>>, vector<16x1xf32>
      %c0_28 = arith.constant 0 : index
      %c0_29 = arith.constant 0 : index
      %43 = vector.load %arg8[%c0_28, %c0_29] : memref<16x1xf32, #tpu.memory_space<vmem>>, vector<16x1xf32>
      %44 = math.log %43 : vector<16x1xf32>
      %45 = arith.addf %42, %44 : vector<16x1xf32>
      %c0_30 = arith.constant 0 : index
      %c0_31 = arith.constant 0 : index
      %46 = vector.load %arg9[%c0_30, %c0_31] : memref<16x1xf32, #tpu.memory_space<vmem>>, vector<16x1xf32>
      %47 = arith.subf %45, %46 : vector<16x1xf32>
      %c0_32 = arith.constant 0 : index
      %c0_33 = arith.constant 0 : index
      %48 = vector.load %arg6[%c0_32, %c0_33] : memref<16x1xf32, #tpu.memory_space<vmem>>, vector<16x1xf32>
      tpu.vector_store %arg6[%c0_32, %c0_33], %47 {strides = array<i32>} : memref<16x1xf32, #tpu.memory_space<vmem>>, vector<16x1xf32>,
    } else {
    }
    return
  }
  func.func @transform_0(%arg0: i32, %arg1: i32) -> (i32, i32) {
    %c0_i32 = arith.constant 0 : i32
    %c0_i32_0 = arith.constant 0 : i32
    return %arg0, %c0_i32 : i32, i32
  }
  func.func @transform_1(%arg0: i32, %arg1: i32) -> (i32, i32) {
    %c0_i32 = arith.constant 0 : i32
    %c0_i32_0 = arith.constant 0 : i32
    return %c0_i32, %arg1 : i32, i32
  }
  func.func @transform_2(%arg0: i32, %arg1: i32) -> (i32, i32) {
    %c0_i32 = arith.constant 0 : i32
    %c0_i32_0 = arith.constant 0 : i32
    return %c0_i32, %arg1 : i32, i32
  }
  func.func @transform_3(%arg0: i32, %arg1: i32) -> (i32, i32) {
    %c0_i32 = arith.constant 0 : i32
    %c0_i32_0 = arith.constant 0 : i32
    return %arg0, %c0_i32 : i32, i32
  }
  func.func @transform_4(%arg0: i32, %arg1: i32) -> (i32, i32) {
    %c0_i32 = arith.constant 0 : i32
    %c0_i32_0 = arith.constant 0 : i32
    return %arg0, %c0_i32 : i32, i32
  }
}

</mosaic_0001>

<llo_original>
// kernel: tpu_custom_call.1
$region0: #{tpu_custom_call.1}
  #allocation0 [shape = 'u32[]', space=smem, size = 0x4, offset = 0x4, fixed_abs, tag = 'smem constant byte address 0x4 - core index']
  #allocation1 [shape = 'u32[144,128]{1,0:T(1,128)}', space=vmem, size = 0x12000, scoped, tag = 'internal scratch']
  #allocation2 [shape = 'f32[16,1]{1,0:T(8,128)}', space=vmem, size = 0x2000, scoped, tag = 'scratch operand']
  #allocation3 [shape = 'f32[16,1]{1,0:T(8,128)}', space=vmem, size = 0x2000, scoped, tag = 'scratch operand']
  #allocation4 [shape = 'f32[16,1]{1,0:T(8,128)}', space=vmem, size = 0x2000, scoped, tag = 'scratch operand']
  %s0 = inlined_call_operand.hbm [shape: bf16[32,32], index: 0, kind: input, shape index: {}]
  %s1 = inlined_call_operand.vmem [shape: bf16[32,256], index: 1, kind: input, shape index: {}]
  %s2 = inlined_call_operand.vmem [shape: f32[1,256], index: 2, kind: input, shape index: {}]
  %s3 = inlined_call_operand.vmem [shape: s32[32,1], index: 3, kind: input, shape index: {}]
  %s4 = inlined_call_operand.vmem [shape: f32[32,1], index: 4, kind: output, shape index: {}]
  %s5 = sld [smem:[#allocation0]]
  $region61: #{tpu_custom_call.1} parent=0
    _
  %s7 = ssub.s32 1, %s5
  %s8 = scalar_select 0, %s7, %s5
  $region1: #{tpu_custom_call.1} parent=0
    #allocation5 [shape = 'u8[8192]{0}', space=vmem, size = 0x2000, scoped, tag = 'input window, operand 0']
    #allocation6 [shape = 's32[2]{0}', space=sflag, size = 0x8, scoped, tag = 'scoped memory for tpu_custom_call.1']
    %9 = vsyncpa [#allocation6], 0
    %s10 = scalar_lea.sflag [#allocation6], 1
    %11 = vsyncpa %s10, 0
    loop: start=0, step=1, limit=4
    $region2: #{tpu_custom_call.1} parent=1 // loop_pre_header
      _
    $region3: #{tpu_custom_call.1} parent=1 // loop_header
      %s13 = sphi 0, %s17
      %p14 = scmp.ge.s32.totalorder %s13, 4
      %s20 = sphi 0, %s32
      %s21 = sphi 0, %s28
      %s22 = sphi 0, %s20
      %s23 = sphi 0, %s21
      %s24 = sphi 0, %s22
      %s25 = sphi 0, %s23
      %s35 = sphi 0, %s37
      %s38 = sphi 0, %s35
      %s39 = sphi 0, %s38
      %s55 = sphi 0, %s39
      %s61 = sphi 0, %s63
      %s64 = sphi 0, %s61
      %s65 = sphi 0, %s64
      %s81 = sphi 0, %s65
      %s87 = sphi 0, %s89
      %s90 = sphi 0, %s87
      %s91 = sphi 0, %s90
      %s107 = sphi 0, %s91
      %s113 = sphi 0, %s115
      %s116 = sphi 0, %s113
      %s117 = sphi 0, %s116
      %s133 = sphi 0, %s117
      %s139 = sphi 0, %s141
      %s142 = sphi 0, %s139
      %s143 = sphi 0, %s142
      %s159 = sphi 0, %s143
    $region4: #{tpu_custom_call.1} parent=1 // loop_header_branch
      %16 = sbr.rel (%p14) target = $region8
    $region5: #{tpu_custom_call.1} parent=1 // loop_body
      %s18 = ssub.s32 %s13, 1
      %s19 = ssub.s32 %s13, 2
      %s26 = sadd.s32 1, %s21
      %p27 = scmp.ge.s32.totalorder %s26, 1
      %s28 = scalar_select %p27, 0, %s26
      %s29 = sadd.s32 1, %s20
      %s30 = scalar_select %p27, %s29, %s20
      %p31 = scmp.ge.s32.totalorder %s30, 2
      %s32 = scalar_select %p31, 0, %s30
      %s33 = ssub.s32 %s20, %s32
      %p34 = scmp.eq.s32.totalorder %s33, 0
      %s36 = sadd.s32 %s35, 1
      %s37 = scalar_select %p34, %s35, %s36
      %p40 = pneg %p34
      %p41 = scmp.eq.s32.totalorder %s13, 1
      %p42 = por %p40, %p41
      %p43 = scmp.ne.s32.totalorder %s35, %s38
      %p44 = scmp.eq.s32.totalorder %s13, 0
      %p45 = por %p43, %p44
      %p46 = scmp.ne.s32.totalorder %s35, %s38
      %p47 = scmp.eq.s32.totalorder %s18, 1
      %p48 = por %p46, %p47
      %p49 = scmp.ne.s32.totalorder %s38, %s39
      %p50 = scmp.eq.s32.totalorder %s18, 0
      %p51 = por %p49, %p50
      %p52 = scmp.ne.s32.totalorder %s38, %s39
      %p53 = scmp.eq.s32.totalorder %s19, 1
      %p54 = por %p52, %p53
      %p56 = scmp.ne.s32.totalorder %s39, %s55
      %p57 = scmp.eq.s32.totalorder %s19, 0
      %p58 = por %p56, %p57
      %s59 = ssub.s32 %s21, %s28
      %p60 = scmp.eq.s32.totalorder %s59, 0
      %s62 = sadd.s32 %s61, 1
      %s63 = scalar_select %p60, %s61, %s62
      %p66 = pneg %p60
      %p67 = scmp.eq.s32.totalorder %s13, 1
      %p68 = por %p66, %p67
      %p69 = scmp.ne.s32.totalorder %s61, %s64
      %p70 = scmp.eq.s32.totalorder %s13, 0
      %p71 = por %p69, %p70
      %p72 = scmp.ne.s32.totalorder %s61, %s64
      %p73 = scmp.eq.s32.totalorder %s18, 1
      %p74 = por %p72, %p73
      %p75 = scmp.ne.s32.totalorder %s64, %s65
      %p76 = scmp.eq.s32.totalorder %s18, 0
      %p77 = por %p75, %p76
      %p78 = scmp.ne.s32.totalorder %s64, %s65
      %p79 = scmp.eq.s32.totalorder %s19, 1
      %p80 = por %p78, %p79
      %p82 = scmp.ne.s32.totalorder %s65, %s81
      %p83 = scmp.eq.s32.totalorder %s19, 0
      %p84 = por %p82, %p83
      %s85 = ssub.s32 %s21, %s28
      %p86 = scmp.eq.s32.totalorder %s85, 0
      %s88 = sadd.s32 %s87, 1
      %s89 = scalar_select %p86, %s87, %s88
      %p92 = pneg %p86
      %p93 = scmp.eq.s32.totalorder %s13, 1
      %p94 = por %p92, %p93
      %p95 = scmp.ne.s32.totalorder %s87, %s90
      %p96 = scmp.eq.s32.totalorder %s13, 0
      %p97 = por %p95, %p96
      %p98 = scmp.ne.s32.totalorder %s87, %s90
      %p99 = scmp.eq.s32.totalorder %s18, 1
      %p100 = por %p98, %p99
      %p101 = scmp.ne.s32.totalorder %s90, %s91
      %p102 = scmp.eq.s32.totalorder %s18, 0
      %p103 = por %p101, %p102
      %p104 = scmp.ne.s32.totalorder %s90, %s91
      %p105 = scmp.eq.s32.totalorder %s19, 1
      %p106 = por %p104, %p105
      %p108 = scmp.ne.s32.totalorder %s91, %s107
      %p109 = scmp.eq.s32.totalorder %s19, 0
      %p110 = por %p108, %p109
      %s111 = ssub.s32 %s20, %s32
      %p112 = scmp.eq.s32.totalorder %s111, 0
      %s114 = sadd.s32 %s113, 1
      %s115 = scalar_select %p112, %s113, %s114
      %p118 = pneg %p112
      %p119 = scmp.eq.s32.totalorder %s13, 1
      %p120 = por %p118, %p119
      %p121 = scmp.ne.s32.totalorder %s113, %s116
      %p122 = scmp.eq.s32.totalorder %s13, 0
      %p123 = por %p121, %p122
      %p124 = scmp.ne.s32.totalorder %s113, %s116
      %p125 = scmp.eq.s32.totalorder %s18, 1
      %p126 = por %p124, %p125
      %p127 = scmp.ne.s32.totalorder %s116, %s117
      %p128 = scmp.eq.s32.totalorder %s18, 0
      %p129 = por %p127, %p128
      %p130 = scmp.ne.s32.totalorder %s116, %s117
      %p131 = scmp.eq.s32.totalorder %s19, 1
      %p132 = por %p130, %p131
      %p134 = scmp.ne.s32.totalorder %s117, %s133
      %p135 = scmp.eq.s32.totalorder %s19, 0
      %p136 = por %p134, %p135
      %s137 = ssub.s32 %s20, %s32
      %p138 = scmp.eq.s32.totalorder %s137, 0
      %s140 = sadd.s32 %s139, 1
      %s141 = scalar_select %p138, %s139, %s140
      %p144 = pneg %p138
      %p145 = scmp.eq.s32.totalorder %s13, 1
      %p146 = por %p144, %p145
      %p147 = scmp.ne.s32.totalorder %s139, %s142
      %p148 = scmp.eq.s32.totalorder %s13, 0
      %p149 = por %p147, %p148
      %p150 = scmp.ne.s32.totalorder %s139, %s142
      %p151 = scmp.eq.s32.totalorder %s18, 1
      %p152 = por %p150, %p151
      %p153 = scmp.ne.s32.totalorder %s142, %s143
      %p154 = scmp.eq.s32.totalorder %s18, 0
      %p155 = por %p153, %p154
      %p156 = scmp.ne.s32.totalorder %s142, %s143
      %p157 = scmp.eq.s32.totalorder %s19, 1
      %p158 = por %p156, %p157
      %p160 = scmp.ne.s32.totalorder %s143, %s159
      %p161 = scmp.eq.s32.totalorder %s19, 0
      %p162 = por %p160, %p161
      %p163 = scmp.le.s32.totalorder 1, %s13
      %p164 = scmp.lt.s32.totalorder %s13, 3
      %p165 = pnand %p163, %p164
      %p166 = pneg %p165
      // Predicated region
      $region9: #{tpu_custom_call.1} parent=5 // pred_check
        _
      $region10: #{tpu_custom_call.1} parent=5 // pred_check_branch
        %168 = sbr.rel (%p165) target = $region12
      $region11: #{tpu_custom_call.1} parent=5 // pred_region
        %s169 = ssub.s32 %s13, 1
        // Predicated region
        $region13: #{tpu_custom_call.1} parent=11 // pred_check
          %p170 = pneg %p77
        $region14: #{tpu_custom_call.1} parent=11 // pred_check_branch
          %172 = sbr.rel (%p170) target = $region16
        $region15: #{tpu_custom_call.1} parent=11 // pred_region
          %s173 = smul.u32 2, %s23
          %p174 = scmp.lt.s32.totalorder %s173, 1
          %s175 = scalar_select %p174, %s173, 1
          %s176 = smul.addr %s175, 4
          %s177 = scalar_lea.vmem %s1, %s176
          %s178 = smul.u32 2, %s23
        $region16: #{tpu_custom_call.1} parent=11 // pred_fallthru
          _
        // Predicated region
        $region17: #{tpu_custom_call.1} parent=11 // pred_check
          %p179 = pneg %p103
        $region18: #{tpu_custom_call.1} parent=11 // pred_check_branch
          %181 = sbr.rel (%p179) target = $region20
        $region19: #{tpu_custom_call.1} parent=11 // pred_region
          %s182 = smul.u32 2, %s23
          %p183 = scmp.lt.s32.totalorder %s182, 1
          %s184 = scalar_select %p183, %s182, 1
          %s185 = scalar_lea.vmem %s2, %s184
          %s186 = smul.u32 2, %s23
        $region20: #{tpu_custom_call.1} parent=11 // pred_fallthru
          _
      $region12: #{tpu_custom_call.1} parent=5 // pred_fallthru
        _
      %p187 = scmp.lt.s32.totalorder %s13, 2
      // Predicated region
      $region21: #{tpu_custom_call.1} parent=5 // pred_check
        %p188 = pneg %p187
      $region22: #{tpu_custom_call.1} parent=5 // pred_check_branch
        %190 = sbr.rel (%p188) target = $region24
      $region23: #{tpu_custom_call.1} parent=5 // pred_region
        // Predicated region
        $region25: #{tpu_custom_call.1} parent=23 // pred_check
          %p191 = pneg %p45
        $region26: #{tpu_custom_call.1} parent=23 // pred_check_branch
          %193 = sbr.rel (%p191) target = $region28
        $region27: #{tpu_custom_call.1} parent=23 // pred_region
          %s194 = sand.u32 %s35, 1
          %s195 = scalar_lea.sflag [#allocation6], %s194
          %s196 = sand.u32 %s35, 1
          %s197 = smul.addr %s196, 8
          %s198 = scalar_lea.vmem [#allocation5], %s197
          %s199 = smul.u32 2, %s20
          %s201 = ssub.s32 128, 128
          %202 = vsyncadd %s195, %s201
          %s203 = smul.addr %s199, 64
          %s204 = scalar_lea.hbm %s0, %s203
          %s205 = sshll.u32 %s198, 4
          %s206 = int_to_ptr.vmem [resolvable:$true] %s205
          %211 = dma.hbm_to_vmem [thread:$0]  %s204, 128, %s206, %s195, 64, 64, 4
        $region28: #{tpu_custom_call.1} parent=23 // pred_fallthru
          _
        // Predicated region
        $region29: #{tpu_custom_call.1} parent=23 // pred_check
          %p212 = pneg %p123
        $region30: #{tpu_custom_call.1} parent=23 // pred_check_branch
          %214 = sbr.rel (%p212) target = $region32
        $region31: #{tpu_custom_call.1} parent=23 // pred_region
          %s215 = smul.u32 2, %s20
          %p216 = scmp.lt.s32.totalorder %s215, 3
          %s217 = scalar_select %p216, %s215, 3
          %s218 = smul.addr %s217, 8
          %s219 = scalar_lea.vmem %s3, %s218
          %s220 = smul.u32 2, %s20
        $region32: #{tpu_custom_call.1} parent=23 // pred_fallthru
          _
      $region24: #{tpu_custom_call.1} parent=5 // pred_fallthru
        _
      %p221 = scmp.le.s32.totalorder 1, %s13
      %p222 = scmp.lt.s32.totalorder %s13, 3
      %p223 = pnand %p221, %p222
      %p224 = pneg %p223
      // Predicated region
      $region33: #{tpu_custom_call.1} parent=5 // pred_check
        _
      $region34: #{tpu_custom_call.1} parent=5 // pred_check_branch
        %226 = sbr.rel (%p223) target = $region36
      $region35: #{tpu_custom_call.1} parent=5 // pred_region
        %s227 = ssub.s32 %s13, 1
        %s228 = sand.u32 %s38, 1
        %s229 = scalar_lea.sflag [#allocation6], %s228
        %s230 = sand.u32 %s38, 1
        %s231 = smul.addr %s230, 8
        %s232 = scalar_lea.vmem [#allocation5], %s231
        // Predicated region
        $region37: #{tpu_custom_call.1} parent=35 // pred_check
          %p233 = pneg %p51
        $region38: #{tpu_custom_call.1} parent=35 // pred_check_branch
          %235 = sbr.rel (%p233) target = $region40
        $region39: #{tpu_custom_call.1} parent=35 // pred_region
          %236 = dma.done %s229, 128
        $region40: #{tpu_custom_call.1} parent=35 // pred_fallthru
          _
        %s237 = sand.u32 %s38, 1
        %s238 = scalar_lea.sflag [#allocation6], %s237
        %s239 = sand.u32 %s38, 1
        %s240 = smul.addr %s239, 8
        %s241 = scalar_lea.vmem [#allocation5], %s240
        %p242 = pneg %p51
        %p243 = pneg %p48
        %s244 = smul.u32 2, %s23
        %p245 = scmp.lt.s32.totalorder %s244, 1
        %s246 = scalar_select %p245, %s244, 1
        %s247 = smul.addr %s246, 4
        %s248 = scalar_lea.vmem %s1, %s247
        %p249 = pneg %p77
        %p250 = pneg %p74
        %s251 = smul.u32 2, %s23
        %p252 = scmp.lt.s32.totalorder %s251, 1
        %s253 = scalar_select %p252, %s251, 1
        %s254 = scalar_lea.vmem %s2, %s253
        %p255 = pneg %p103
        %p256 = pneg %p100
        %s257 = smul.u32 2, %s22
        %p258 = scmp.lt.s32.totalorder %s257, 3
        %s259 = scalar_select %p258, %s257, 3
        %s260 = smul.addr %s259, 8
        %s261 = scalar_lea.vmem %s3, %s260
        %p262 = pneg %p129
        %p263 = pneg %p126
        %p264 = pneg %p155
        %p265 = pneg %p152
        %s266 = smul.u32 2, %s22
        %p267 = scmp.lt.s32.totalorder %s266, 3
        %s268 = scalar_select %p267, %s266, 3
        %s269 = smul.addr %s268, 8
        %s270 = scalar_lea.vmem %s4, %s269
        %s271 = smul.u32 2, %s22
        %s272 = smul.u32 2, %s23
        %p273 = scmp.lt.s32.totalorder %s272, 1
        %s274 = scalar_select %p273, %s272, 1
        %s275 = smul.addr %s274, 4
        %s276 = scalar_lea.vmem %s1, %s275
        %s277 = smul.u32 2, %s23
        %s278 = smul.u32 2, %s23
        %p279 = scmp.lt.s32.totalorder %s278, 1
        %s280 = scalar_select %p279, %s278, 1
        %s281 = scalar_lea.vmem %s2, %s280
        %s282 = smul.u32 2, %s23
        %s283 = smul.u32 2, %s22
        %p284 = scmp.lt.s32.totalorder %s283, 3
        %s285 = scalar_select %p284, %s283, 3
        %s286 = smul.addr %s285, 8
        %s287 = scalar_lea.vmem %s3, %s286
        %s288 = smul.u32 2, %s22
        %s289 = smul.u32 2, %s22
        %p290 = scmp.lt.s32.totalorder %s289, 3
        %s291 = scalar_select %p290, %s289, 3
        %s292 = smul.addr %s291, 8
        %s293 = scalar_lea.vmem %s4, %s292
        %s294 = smul.u32 2, %s22
        %p296 = scmp.eq.s32.totalorder %s23, 0
        // Predicated region
        $region41: #{tpu_custom_call.1} parent=35 // pred_check
          %p297 = pneg %p296
        $region42: #{tpu_custom_call.1} parent=35 // pred_check_branch
          %299 = sbr.rel (%p297) target = $region44
        $region43: #{tpu_custom_call.1} parent=35 // pred_region
          %vm300 = vcmask 7168
          %301 = vst.msk [vmem:[#allocation2] sm:$0xff] %vm300, -1e+30
          %302 = vst.msk [vmem:[#allocation2 + $0x8] sm:$0xff] %vm300, -1e+30
          %303 = vst.msk [vmem:[#allocation3] sm:$0xff] %vm300, 0.0
          %304 = vst.msk [vmem:[#allocation3 + $0x8] sm:$0xff] %vm300, 0.0
          %305 = vst.msk [vmem:[#allocation4] sm:$0xff] %vm300, 0.0
          %306 = vst.msk [vmem:[#allocation4 + $0x8] sm:$0xff] %vm300, 0.0
        $region44: #{tpu_custom_call.1} parent=35 // pred_fallthru
          _
        %v307 = vld [vmem:[%s232] sm:$0xf]
        %v308 = vld [vmem:[%s232 + $0x4] sm:$0xf]
        %v309 = vld [vmem:[%s276] sm:$0xff]
        %v310 = vld [vmem:[%s276 + $0x8] sm:$0xff]
        %v311 = vld [vmem:[%s276 + $0x10] sm:$0xff]
        %v312 = vld [vmem:[%s276 + $0x18] sm:$0xff]
        %v313 = vld [vmem:[%s281] sm:$0x3]
        %v315 = vlaneseq
        %v316 = vshrl.u32 %v315, 7
        %v317 = vsub.s32 0, %v316
        %v318 = vrot.slane %v313, %v317
        %v319 = vlaneseq
        %v320 = vshrl.u32 %v319, 7
        %v321 = vsub.s32 1, %v320
        %v322 = vrot.slane %v313, %v321
        %v327 = vunpack.c.l.b16 %v307
        %v328 = vunpack.c.l.b16 %v308
        %v329 = vpack.c.b16 %v328, %v327
        %v334 = vunpack.c.l.b16 %v309
        %v335 = vunpack.c.h.b16 %v309
        %v336 = vunpack.c.l.b16 %v310
        %v337 = vunpack.c.h.b16 %v310
        %v338 = vunpack.c.l.b16 %v311
        %v339 = vunpack.c.h.b16 %v311
        %v340 = vunpack.c.l.b16 %v312
        %v341 = vunpack.c.h.b16 %v312
        %v342 = vpack.c.b16 %v336, %v334
        %v343 = vpack.c.b16 %v337, %v335
        %v344 = vpack.c.b16 %v340, %v338
        %v345 = vpack.c.b16 %v341, %v339
        %vm350 = vcmask 261120
        %v352 = vsel %vm350, %v329, 0
        %354 = vmatprep.subr.bf16.mxu0 0
        %355 = vmatpush1.bf16.msra.mxu0 0
        %356 = vmatprep.subr.bf16.mxu0 0
        %357 = vmatpush1.bf16.msra.mxu0 0
        %358 = vmatprep.subr.bf16.mxu0 0
        %359 = vmatpush1.bf16.msra.mxu0 0
        %360 = vmatprep.subr.bf16.mxu0 0
        %361 = vmatpush1.bf16.msra.mxu0 0
        %362 = vmatprep.subr.bf16.mxu0 0
        %363 = vmatpush1.bf16.msra.mxu0 0
        %364 = vmatprep.subr.bf16.mxu0 0
        %365 = vmatpush1.bf16.msra.mxu0 0
        %366 = vmatprep.subr.bf16.mxu0 %v345
        %367 = vmatpush1.bf16.msra.mxu0 %v344
        %368 = vmatprep.subr.bf16.mxu0 %v343
        %369 = vmatpush1.bf16.msra.mxu0 %v342
        %370 = vmatprep.subr.bf16.mxu0 0
        %371 = vmatpush2.bf16.msra.mxu0 0
        %372 = vmatprep.subr.bf16.mxu0 0
        %373 = vmatpush2.bf16.msra.mxu0 0
        %374 = vmatprep.subr.bf16.mxu0 0
        %375 = vmatpush2.bf16.msra.mxu0 0
        %376 = vmatprep.subr.bf16.mxu0 0
        %377 = vmatpush2.bf16.msra.mxu0 0
        %378 = vmatprep.subr.bf16.mxu0 0
        %379 = vmatpush2.bf16.msra.mxu0 0
        %380 = vmatprep.subr.bf16.mxu0 0
        %381 = vmatpush2.bf16.msra.mxu0 0
        %382 = vmatprep.subr.bf16.mxu0 0
        %383 = vmatpush2.bf16.msra.mxu0 0
        %384 = vmatprep.subr.bf16.mxu0 0
        %385 = vmatpush2.bf16.msra.mxu0 0
        %386 = vmatprep.mubr.bf16.mxu0 0
        %387 = vmatmul.mubr.bf16.gmra.mxu0 %v352
        %v388 = vpop.f32.mrf.mxu0
        %v389 = vadd.f32 %v318, %v388
        %v390 = vpop.f32.mrf.mxu0
        %v391 = vadd.f32 %v322, %v390
        %v392 = vpop.f32.mrf.mxu0
        %v393 = vadd.f32 %v318, %v392
        %v394 = vpop.f32.mrf.mxu0
        %v395 = vadd.f32 %v322, %v394
        %396 = vdwg.mxu0
        %v397 = vld [vmem:[#allocation2] sm:$0xff]
        %v398 = vld [vmem:[#allocation2 + $0x8] sm:$0xff]
        %v399 = vmax.f32 %v389, %v391
        %400 = vmax.xlane.f32.xlu0 %v399
        %v401 = vpop.xlane.xlu0 %400
        %v402 = vmax.f32 %v393, %v395
        %403 = vmax.xlane.f32.xlu0 %v402
        %v404 = vpop.xlane.xlu0 %403
        %v405 = vmax.f32 %v397, %v401
        %v406 = vmax.f32 %v398, %v404
        %v407 = vsub.f32 %v397, %v405
        %v408 = vsub.f32 %v398, %v406
        %v409 = vmul.f32 %v407, 1.442695
        %v410 = vpow.pop %v409
        %v411 = vmul.f32 %v408, 1.442695
        %v412 = vpow.pop %v411
        %v413 = vld [vmem:[#allocation3] sm:$0xff]
        %v414 = vld [vmem:[#allocation3 + $0x8] sm:$0xff]
        %v415 = vmul.f32 %v413, %v410
        %v416 = vmul.f32 %v414, %v412
        %418 = vset.pattern.permute.xlu0 0
        %419 = vperm.xlu0 %418, %v405
        %v420 = vpop.permute.xlu0 %419
        %423 = vset.pattern.permute.xlu0 0
        %424 = vperm.xlu0 %423, %v406
        %v425 = vpop.permute.xlu0 %424
        %v427 = vsub.f32 %v389, %v420
        %v428 = vsub.f32 %v391, %v420
        %v429 = vsub.f32 %v393, %v425
        %v430 = vsub.f32 %v395, %v425
        %v431 = vmul.f32 %v427, 1.442695
        %v432 = vpow.pop %v431
        %v433 = vmul.f32 %v428, 1.442695
        %v434 = vpow.pop %v433
        %v435 = vmul.f32 %v429, 1.442695
        %v436 = vpow.pop %v435
        %v437 = vmul.f32 %v430, 1.442695
        %v438 = vpow.pop %v437
        %v439 = vadd.f32 %v432, %v434
        %440 = vadd.xlane.f32.xlu0 %v439
        %v441 = vpop.xlane.xlu0 %440
        %v442 = vadd.f32 %v436, %v438
        %443 = vadd.xlane.f32.xlu0 %v442
        %v444 = vpop.xlane.xlu0 %443
        %v445 = vadd.f32 %v415, %v441
        %v446 = vadd.f32 %v416, %v444
        %vm447 = vcmask 7168
        %448 = vst.msk [vmem:[#allocation3] sm:$0xff] %vm447, %v445
        %449 = vst.msk [vmem:[#allocation3 + $0x8] sm:$0xff] %vm447, %v446
        %450 = vst.msk [vmem:[#allocation2] sm:$0xff] %vm447, %v405
        %451 = vst.msk [vmem:[#allocation2 + $0x8] sm:$0xff] %vm447, %v406
        %v452 = vlaneseq
        %v453 = vand.u32 %v452, 127
        %v454 = vadd.s32 %v453, 128
        %v455 = vld [vmem:[%s287] sm:$0xff]
        %v456 = vld [vmem:[%s287 + $0x8] sm:$0xff]
        %s457 = smul.u32 %s23, 256
        %v458 = vstv %s457
        %v459 = vsub.s32 %v455, %v458
        %v460 = vsub.s32 %v456, %v458
        %461 = vset.pattern.permute.xlu0 0
        %462 = vperm.xlu0 %461, %v459
        %v463 = vpop.permute.xlu0 %462
        %464 = vset.pattern.permute.xlu0 0
        %465 = vperm.xlu0 %464, %v460
        %v466 = vpop.permute.xlu0 %465
        %vm467 = vcmp.eq.s32.totalorder %v453, %v463
        %vm468 = vcmp.eq.s32.totalorder %v454, %v463
        %vm469 = vcmp.eq.s32.totalorder %v453, %v466
        %vm470 = vcmp.eq.s32.totalorder %v454, %v466
        %v471 = vld [vmem:[#allocation4] sm:$0xff]
        %v472 = vld [vmem:[#allocation4 + $0x8] sm:$0xff]
        %v473 = vsel %vm467, %v389, 0.0
        %v474 = vsel %vm468, %v391, 0.0
        %v475 = vsel %vm469, %v393, 0.0
        %v476 = vsel %vm470, %v395, 0.0
        %v477 = vadd.f32 %v473, %v474
        %478 = vadd.xlane.f32.xlu0 %v477
        %v479 = vpop.xlane.xlu0 %478
        %v480 = vadd.f32 %v475, %v476
        %481 = vadd.xlane.f32.xlu0 %v480
        %v482 = vpop.xlane.xlu0 %481
        %v483 = vadd.f32 %v471, %v479
        %v484 = vadd.f32 %v472, %v482
        %485 = vst.msk [vmem:[#allocation4] sm:$0xff] %vm447, %v483
        %486 = vst.msk [vmem:[#allocation4 + $0x8] sm:$0xff] %vm447, %v484
        // Predicated region
        $region45: #{tpu_custom_call.1} parent=35 // pred_check
          %p487 = pneg %p296
        $region46: #{tpu_custom_call.1} parent=35 // pred_check_branch
          %489 = sbr.rel (%p487) target = $region48
        $region47: #{tpu_custom_call.1} parent=35 // pred_region
          %v490 = vld [vmem:[#allocation2] sm:$0xff]
          %v491 = vld [vmem:[#allocation2 + $0x8] sm:$0xff]
          %v492 = vld [vmem:[#allocation3] sm:$0xff]
          %v493 = vld [vmem:[#allocation3 + $0x8] sm:$0xff]
          %v494 = vlog2.pop %v492
          %v495 = vmul.f32 %v494, 0.6931472
          %v496 = vlog2.pop %v493
          %v497 = vmul.f32 %v496, 0.6931472
          %v498 = vadd.f32 %v490, %v495
          %v499 = vadd.f32 %v491, %v497
          %v500 = vld [vmem:[#allocation4] sm:$0xff]
          %v501 = vld [vmem:[#allocation4 + $0x8] sm:$0xff]
          %v502 = vsub.f32 %v498, %v500
          %v503 = vsub.f32 %v499, %v501
          %504 = vst.msk [vmem:[%s293] sm:$0xff] %vm447, %v502
          %505 = vst.msk [vmem:[%s293 + $0x8] sm:$0xff] %vm447, %v503
        $region48: #{tpu_custom_call.1} parent=35 // pred_fallthru
          _
        %s506 = smul.u32 2, %s22
        %p507 = scmp.lt.s32.totalorder %s506, 3
        %s508 = scalar_select %p507, %s506, 3
        %s509 = smul.addr %s508, 8
        %s510 = scalar_lea.vmem %s4, %s509
        // Predicated region
        $region49: #{tpu_custom_call.1} parent=35 // pred_check
          %p511 = pneg %p152
        $region50: #{tpu_custom_call.1} parent=35 // pred_check_branch
          %513 = sbr.rel (%p511) target = $region52
        $region51: #{tpu_custom_call.1} parent=35 // pred_region
          %s514 = smul.u32 2, %s22
        $region52: #{tpu_custom_call.1} parent=35 // pred_fallthru
          _
      $region36: #{tpu_custom_call.1} parent=5 // pred_fallthru
        _
      %p515 = scmp.le.s32.totalorder 2, %s13
      // Predicated region
      $region53: #{tpu_custom_call.1} parent=5 // pred_check
        %p516 = pneg %p515
      $region54: #{tpu_custom_call.1} parent=5 // pred_check_branch
        %518 = sbr.rel (%p516) target = $region56
      $region55: #{tpu_custom_call.1} parent=5 // pred_region
        %s519 = ssub.s32 %s13, 2
        // Predicated region
        $region57: #{tpu_custom_call.1} parent=55 // pred_check
          %p520 = pneg %p158
        $region58: #{tpu_custom_call.1} parent=55 // pred_check_branch
          %522 = sbr.rel (%p520) target = $region60
        $region59: #{tpu_custom_call.1} parent=55 // pred_region
          %s523 = smul.u32 2, %s24
          %p524 = scmp.lt.s32.totalorder %s523, 3
          %s525 = scalar_select %p524, %s523, 3
          %s526 = smul.addr %s525, 8
          %s527 = scalar_lea.vmem %s4, %s526
        $region60: #{tpu_custom_call.1} parent=55 // pred_fallthru
          _
      $region56: #{tpu_custom_call.1} parent=5 // pred_fallthru
        _
    $region6: #{tpu_custom_call.1} parent=1 // loop_footer
      %s17 = sadd.s32 1, %s13
    $region7: #{tpu_custom_call.1} parent=1 // loop_footer_branch
      %12 = sbr.rel target = $region3
    $region8: #{tpu_custom_call.1} parent=1 // loop_exit
      _
    %528 = vsyncpa [#allocation6], 1
    %s529 = scalar_lea.sflag [#allocation6], 1
    %530 = vsyncpa %s529, 1

</llo_original>
